<compile_context>
chip_gen: v7x
topology: tpu7x:2x2x1
jax: 0.10.0
libtpu: 0.0.40
codegen_flags: <defaults>
</compile_context>

<pallas_src>
import math

import jax
import jax.numpy as jnp
import numpy as np
from jax.experimental import pallas as pl
from jax.experimental.pallas import tpu as pltpu


def compute_llama3_inv_freq(dim,
                            base=500000.0,
                            factor=8.0,
                            low_freq_factor=1.0,
                            high_freq_factor=4.0,
                            original_max_position_embeddings=8192):
    """fp32 Llama3-scaled inverse frequencies, shape (dim // 2,)."""
    old_context_len = float(original_max_position_embeddings)
    exponents = jnp.arange(0, dim, 2, dtype=jnp.float32) / dim   # x64-safe
    inv_freq = 1.0 / (base ** exponents)                         # (dim//2,), fp32

    low_freq_wavelen = old_context_len / low_freq_factor
    high_freq_wavelen = old_context_len / high_freq_factor

    wavelen = 2.0 * math.pi / inv_freq
    smooth = (old_context_len / wavelen - low_freq_factor) / (
        high_freq_factor - low_freq_factor)
    smoothed = (1.0 - smooth) * inv_freq / factor + smooth * inv_freq

    new_freqs = jnp.where(
        wavelen < high_freq_wavelen,
        inv_freq,
        jnp.where(wavelen > low_freq_wavelen, inv_freq / factor, smoothed),
    )
    return new_freqs.astype(jnp.float32)


def _rope_kernel(pos_ref, inv_ref, cos_ref, sin_ref):
    # pos_ref: (TR, 1) int32
    # inv_ref: (1, dim) f32  -- already contains [inv_freq, inv_freq]
    # cos_ref / sin_ref: (TR, dim) in the output dtype
    pos = pos_ref[...].astype(jnp.float32)           # free VPU cast
    freqs = pos * inv_ref[...]                        # (TR, dim) VPU broadcast mul (no MXU)
    # NOTE: fp32 cos/sin argument reduction matches the HF fp32 path; at very
    # long context (pos ~1e5) absolute accuracy of the highest frequencies is
    # ~1e-3, same as the PyTorch reference.
    cos_ref[...] = jnp.cos(freqs).astype(cos_ref.dtype)   # cast before store
    sin_ref[...] = jnp.sin(freqs).astype(sin_ref.dtype)


def _round_up(n, m):
    return ((n + m - 1) // m) * m


def llama3_rotary_embedding(x, position_ids, inv_freq, row_tile=2048):
    """Pallas equivalent of Llama3RotaryEmbedding.forward.

    x:            any array; only its dtype is used (matches PyTorch semantics,
                  attention_scaling == 1.0 for rope_type='llama3').
    position_ids: (B, S) integer positions.
    inv_freq:     (dim//2,) fp32 scaled inverse frequencies.
    Returns (cos, sin), each (B, S, dim) in x.dtype.
    """
    B, S = position_ids.shape
    half = inv_freq.shape[0]
    dim = 2 * half
    out_dtype = x.dtype

    # Batch de-dup: if positions are concrete (not traced) and identical across
    # batch rows, compute the table once and broadcast lazily.
    dedup = False
    if B > 1:
        try:
            pos_np = np.asarray(position_ids)
            dedup = bool((pos_np == pos_np[:1]).all())
        except Exception:
            dedup = False  # traced inside jit -> general path

    pos2d = position_ids[:1] if dedup else position_ids
    nb = pos2d.shape[0]
    N = nb * S                      # independent rows

    # Row tiling: no padding; the edge block (if any) is masked by Pallas.
    if N <= 8:
        tr = N                      # single full-array tile (no alignment rule)
    else:
        # >= 2 tiles so v7x megacore can shard the grid; tr multiple of 8.
        tr = min(row_tile, _round_up(-(-N // 2), 8))
    num_tiles = pl.cdiv(N, tr)

    pos_flat = pos2d.reshape(N, 1).astype(jnp.int32)
    # Pre-duplicate the halves once in the wrapper -> no in-kernel lane concat.
    # TODO(synk): for hypothetical dim >= 256 (half >= 128) a half-width
    # cos/sin + duplicate variant would halve EUP work; not needed for dim=128.
    inv_full = jnp.concatenate([inv_freq, inv_freq]).reshape(1, dim).astype(jnp.float32)

    out_bytes = jnp.dtype(out_dtype).itemsize
    cost = pl.CostEstimate(
        flops=N * dim,
        transcendentals=2 * N * dim,
        bytes_accessed=N * 4 + dim * 4 + 2 * N * dim * out_bytes,
    )

    cos_flat, sin_flat = pl.pallas_call(
        _rope_kernel,
        grid=(num_tiles,),
        in_specs=[
            pl.BlockSpec((tr, 1), lambda i: (i, 0)),
            pl.BlockSpec((1, dim), lambda i: (0, 0)),
        ],
        out_specs=(
            pl.BlockSpec((tr, dim), lambda i: (i, 0)),
            pl.BlockSpec((tr, dim), lambda i: (i, 0)),
        ),
        out_shape=(
            jax.ShapeDtypeStruct((N, dim), out_dtype),
            jax.ShapeDtypeStruct((N, dim), out_dtype),
        ),
        compiler_params=pltpu.CompilerParams(
            dimension_semantics=("parallel",),
            vmem_limit_bytes=32 * 1024 * 1024,
        ),
        cost_estimate=cost,
    )(pos_flat, inv_full)

    cos = cos_flat.reshape(nb, S, dim)
    sin = sin_flat.reshape(nb, S, dim)
    if dedup:
        cos = jnp.broadcast_to(cos, (B, S, dim))
        sin = jnp.broadcast_to(sin, (B, S, dim))
    return cos, sin


def _reference(position_ids, inv_freq):
    inv_np = np.asarray(inv_freq, dtype=np.float32)
    pos_np = np.asarray(position_ids, dtype=np.float32)
    freqs = pos_np[:, :, None] * inv_np[None, None, :]      # (B, S, half)
    emb = np.concatenate([freqs, freqs], axis=-1)           # (B, S, dim)
    return np.cos(emb), np.sin(emb)


if __name__ == "__main__":
    # Production head dim (128) so output stores are lane-dense; small B/S.
    B, S, dim, hidden = 2, 8, 128, 128

    key = jax.random.PRNGKey(0)
    x = jax.random.normal(key, (B, S, hidden), dtype=jnp.float32)
    inv_freq = compute_llama3_inv_freq(dim)

    # Case 1: arange positions shared across batch (exercises batch de-dup).
    pos_shared = jnp.tile(jnp.arange(S, dtype=jnp.int32)[None, :], (B, 1))
    cos1, sin1 = jax.block_until_ready(llama3_rotary_embedding(x, pos_shared, inv_freq))
    c_ref, s_ref = _reference(pos_shared, inv_freq)
    np.testing.assert_allclose(np.asarray(cos1), c_ref, rtol=1e-5, atol=1e-5)
    np.testing.assert_allclose(np.asarray(sin1), s_ref, rtol=1e-5, atol=1e-5)
    assert cos1.shape == (B, S, dim) and sin1.shape == (B, S, dim)
    assert cos1.dtype == x.dtype and sin1.dtype == x.dtype

    # Case 2: distinct positions per batch row (exercises the general tiled path).
    pos_distinct = jnp.stack(
        [jnp.arange(S, dtype=jnp.int32), jnp.arange(S, dtype=jnp.int32) + 100], axis=0)
    cos2, sin2 = jax.block_until_ready(llama3_rotary_embedding(x, pos_distinct, inv_freq))
    c_ref2, s_ref2 = _reference(pos_distinct, inv_freq)
    np.testing.assert_allclose(np.asarray(cos2), c_ref2, rtol=1e-5, atol=1e-5)
    np.testing.assert_allclose(np.asarray(sin2), s_ref2, rtol=1e-5, atol=1e-5)
    assert cos2.shape == (B, S, dim) and sin2.shape == (B, S, dim)

    print("KERNEL_OK")
</pallas_src>

<mosaic_0001>
module attributes {stable_mosaic.version = 11 : i64} {
  func.func @_rope_kernel(%arg0: i32, %arg1: memref<8x1xi32, #tpu.memory_space<vmem>>, %arg2: memref<1x128xf32, #tpu.memory_space<vmem>>, %arg3: memref<8x128xf32, #tpu.memory_space<vmem>>, %arg4: memref<8x128xf32, #tpu.memory_space<vmem>>) attributes {dimension_semantics = [#tpu.dimension_semantics<parallel>], iteration_bounds = array<i64: 1>, scalar_prefetch = 0 : i64, scratch_operands = 0 : i64, tpu.core_type = #tpu.core_type<tc>, window_params = [{transform_indices = @transform_0, window_bounds = array<i64: 8, 1>}, {pipeline_mode = #tpu.pipeline_mode<synchronous>, transform_indices = @transform_1, window_bounds = array<i64: 1, 128>}, {transform_indices = @transform_2, window_bounds = array<i64: 8, 128>}, {transform_indices = @transform_3, window_bounds = array<i64: 8, 128>}]} {
    %c0 = arith.constant 0 : index
    %c0_0 = arith.constant 0 : index
    %0 = vector.load %arg1[%c0, %c0_0] : memref<8x1xi32, #tpu.memory_space<vmem>>, vector<8x1xi32>
    %1 = arith.sitofp %0 : vector<8x1xi32> to vector<8x1xf32>
    %c0_1 = arith.constant 0 : index
    %c0_2 = arith.constant 0 : index
    %2 = vector.load %arg2[%c0_1, %c0_2] : memref<1x128xf32, #tpu.memory_space<vmem>>, vector<1x128xf32>
    %3 = vector.broadcast %1 : vector<8x1xf32> to vector<8x128xf32>
    %4 = vector.broadcast %2 : vector<1x128xf32> to vector<8x128xf32>
    %5 = arith.mulf %3, %4 : vector<8x128xf32>
    %6 = math.cos %5 : vector<8x128xf32>
    %c0_3 = arith.constant 0 : index
    %c0_4 = arith.constant 0 : index
    %7 = vector.load %arg3[%c0_3, %c0_4] : memref<8x128xf32, #tpu.memory_space<vmem>>, vector<8x128xf32>
    tpu.vector_store %arg3[%c0_3, %c0_4], %6 {strides = array<i32>} : memref<8x128xf32, #tpu.memory_space<vmem>>, vector<8x128xf32>,
    %8 = math.sin %5 : vector<8x128xf32>
    %c0_5 = arith.constant 0 : index
    %c0_6 = arith.constant 0 : index
    %9 = vector.load %arg4[%c0_5, %c0_6] : memref<8x128xf32, #tpu.memory_space<vmem>>, vector<8x128xf32>
    tpu.vector_store %arg4[%c0_5, %c0_6], %8 {strides = array<i32>} : memref<8x128xf32, #tpu.memory_space<vmem>>, vector<8x128xf32>,
    return
  }
  func.func @transform_0(%arg0: i32) -> (i32, i32) {
    %c0_i32 = arith.constant 0 : i32
    %c0_i32_0 = arith.constant 0 : i32
    return %arg0, %c0_i32 : i32, i32
  }
  func.func @transform_1(%arg0: i32) -> (i32, i32) {
    %c0_i32 = arith.constant 0 : i32
    %c0_i32_0 = arith.constant 0 : i32
    %c0_i32_1 = arith.constant 0 : i32
    return %c0_i32, %c0_i32_0 : i32, i32
  }
  func.func @transform_2(%arg0: i32) -> (i32, i32) {
    %c0_i32 = arith.constant 0 : i32
    %c0_i32_0 = arith.constant 0 : i32
    return %arg0, %c0_i32 : i32, i32
  }
  func.func @transform_3(%arg0: i32) -> (i32, i32) {
    %c0_i32 = arith.constant 0 : i32
    %c0_i32_0 = arith.constant 0 : i32
    return %arg0, %c0_i32 : i32, i32
  }
}

</mosaic_0001>

<llo_original>
// kernel: tpu_custom_call.1
$region0: #{tpu_custom_call.1}
  #allocation0 [shape = 'u32[]', space=smem, size = 0x4, offset = 0x4, fixed_abs, tag = 'smem constant byte address 0x4 - core index']
  #allocation1 [shape = 'u32[144,128]{1,0:T(1,128)}', space=vmem, size = 0x12000, scoped, tag = 'internal scratch']
  %s0 = inlined_call_operand.vmem [shape: s32[8,1], index: 0, kind: input, shape index: {}]
  %s1 = inlined_call_operand.vmem [shape: f32[1,128], index: 1, kind: input, shape index: {}]
  %s2 = inlined_call_operand.hbm [shape: f32[8,128], index: 2, kind: output, shape index: {0}]
  %s3 = inlined_call_operand.hbm [shape: f32[8,128], index: 3, kind: output, shape index: {1}]
  %4 = xla_tuple %s2, %s3
  %s5 = sld [smem:[#allocation0]]
  $region26: #{tpu_custom_call.1} parent=0
    _
  %s7 = ssub.s32 1, %s5
  %s8 = scalar_select 0, %s7, %s5
  $region1: #{tpu_custom_call.1} parent=0
    #allocation2 [shape = 'u8[4096]{0}', space=vmem, size = 0x1000, scoped, tag = 'output window, operand 0, single buffered']
    #allocation3 [shape = 's32[1]{0}', space=sflag, size = 0x4, scoped, tag = 'scoped memory for tpu_custom_call.1']
    #allocation4 [shape = 'u8[4096]{0}', space=vmem, size = 0x1000, scoped, tag = 'output window, operand 1, single buffered']
    #allocation5 [shape = 's32[1]{0}', space=sflag, size = 0x4, scoped, tag = 'scoped memory for tpu_custom_call.1']
    %9 = vsyncpa [#allocation3], 0
    %10 = vsyncpa [#allocation5], 0
    // Predicated region
    $region2: #{tpu_custom_call.1} parent=1 // pred_check
      _
    $region3: #{tpu_custom_call.1} parent=1 // pred_check_branch
      %12 = sbr.rel (0) target = $region5
    $region4: #{tpu_custom_call.1} parent=1 // pred_region
      _
    $region5: #{tpu_custom_call.1} parent=1 // pred_fallthru
      _
    // Predicated region
    $region6: #{tpu_custom_call.1} parent=1 // pred_check
      _
    $region7: #{tpu_custom_call.1} parent=1 // pred_check_branch
      %14 = sbr.rel (0) target = $region9
    $region8: #{tpu_custom_call.1} parent=1 // pred_region
      _
    $region9: #{tpu_custom_call.1} parent=1 // pred_fallthru
      _
    %v15 = vld [vmem:[%s0] sm:$0xff]
    %v16 = vcvt.s32.f32 %v15
    %v17 = vld [vmem:[%s1] sm:$0x1]
    %19 = vset.pattern.permute.xlu0 0
    %20 = vperm.xlu0 %19, %v16
    %v21 = vpop.permute.xlu0 %20
    %v24 = vlaneseq
    %v25 = vshrl.u32 %v24, 7
    %v26 = vsub.s32 0, %v25
    %v27 = vrot.slane %v17, %v26
    %v29 = vmul.f32 %v21, %v27
    %v30 = vand.u32 2147483647, %v29
    %vm31 = vcmp.le.f32.partialorder %v30, 0.7853982
    %vm32 = vcmp.lt.s32.totalorder %v29, 0
    %v33 = vand.u32 %v29, 2139095040
    %v34 = vshrl.u32 %v33, 23
    %v35 = vsub.s32 %v34, 127
    %v36 = vand.u32 2147483647, %v29
    %v37 = vand.u32 %v36, 8388607
    %v38 = vor.u32 %v37, 8388608
    %v39 = vsub.s32 0, %v38
    %v40 = vadd.s32 %v35, 1
    %vm41 = vcmp.gt.s32.totalorder %v40, 0
    %v42 = vsel %vm41, %v40, 0
    %v43 = vshrl.u32 %v42, 5
    %v44 = vand.u32 %v42, 31
    %v45 = vsub.s32 32, %v44
    %v46 = vshrl.u32 683565275, %v45
    %v47 = vshll.u32 683565275, %v44
    %v48 = vshrl.u32 2475754826, %v45
    %v49 = vor.u32 %v47, %v48
    %v50 = vshll.u32 2475754826, %v44
    %v51 = vshrl.u32 2131351028, %v45
    %v52 = vor.u32 %v50, %v51
    %v53 = vshll.u32 2131351028, %v44
    %v54 = vshrl.u32 2102212464, %v45
    %v55 = vor.u32 %v53, %v54
    %v56 = vshll.u32 2102212464, %v44
    %v57 = vshrl.u32 920167782, %v45
    %v58 = vor.u32 %v56, %v57
    %v59 = vshll.u32 920167782, %v44
    %v60 = vshrl.u32 1326507024, %v45
    %v61 = vor.u32 %v59, %v60
    %vm62 = vcmp.lt.s32.totalorder %v43, 1
    %vm63 = vcmp.lt.s32.totalorder %v43, 2
    %vm64 = vcmp.lt.s32.totalorder %v43, 3
    %vm65 = vcmp.lt.s32.totalorder %v43, 4
    %v66 = vsel %vm62, %v46, %v49
    %v67 = vsel %vm65, %v55, 2102212464
    %v68 = vsel %vm64, %v52, %v67
    %v69 = vsel %vm63, %v66, %v68
    %v70 = vsel %vm62, %v49, %v52
    %v71 = vsel %vm65, %v58, 920167782
    %v72 = vsel %vm64, %v55, %v71
    %v73 = vsel %vm63, %v70, %v72
    %v74 = vsel %vm62, %v52, %v55
    %v75 = vsel %vm65, %v61, 1326507024
    %v76 = vsel %vm64, %v58, %v75
    %v77 = vsel %vm63, %v74, %v76
    %v78 = vshll.u32 %v38, 8
    %v79 = vmul.u32.u64.compose %v78, %v77
    %v80 = vextract.low.u32 %v79
    %v81 = vextract.high.u32 %v79
    %v82 = vmul.u32.u64.compose %v78, %v73
    %v83 = vextract.low.u32 %v82
    %v84 = vextract.high.u32 %v82
    %v85 = vmul.u32 %v78, %v69
    %v86 = vadd.s32 %v81, %v83
    %vm87 = vc.u32 %v81, %v83
    %v88 = vadd.s32 %v84, 1
    %v89 = vsel %vm87, %v88, %v84
    %v90 = vadd.s32 %v85, %v89
    %v91 = vadd.s32 %v90, 536870912
    %v92 = vshrl.u32 %v91, 30
    %v93 = vshll.u32 %v92, 30
    %v94 = vsub.s32 %v90, %v93
    %vm95 = vcmp.lt.s32.totalorder %v94, 0
    %v96 = vsub.s32 0, %v94
    %v97 = vsel %vm95, %v96, %v94
    %v98 = vclz %v97
    %v99 = vsub.s32 %v98, 2
    %vm100 = vcmp.gt.s32.totalorder 0, %v99
    %v101 = vsel %vm100, 0, %v99
    %v102 = vsub.s32 32, %v101
    %v103 = vshll.u32 %v94, %v101
    %v104 = vshrl.u32 %v86, %v102
    %v105 = vor.u32 %v103, %v104
    %v106 = vsub.s32 4294967266, %v101
    %v107 = vadd.s32 %v106, 127
    %v108 = vshll.u32 %v107, 23
    %v109 = vor.u32 4788187, %v108
    %v110 = vand.u32 2147483647, %v109
    %v112 = vcvt.s32.f32 %v105
    %v113 = vmul.f32 %v112, %v110
    %v114 = vxor.u32 %v113, 2147483648
    %v115 = vsel %vm32, %v114, %v113
    %v116 = vsub.s32 4, %v92
    %v117 = vsel %vm32, %v116, %v92
    %v118 = vsel %vm31, %v29, %v115
    %v119 = vsel %vm31, 0, %v117
    %v120 = vcosq.f32.pop %v118
    %v121 = vsinq.f32.pop %v118
    %vm122 = vweird.f32 %v29
    %v123 = vand.u32 %v119, 3
    %vm124 = vcmp.lt.s32.totalorder %v123, 2
    %vm125 = vcmp.eq.s32.totalorder %v123, 0
    %v126 = vxor.u32 %v121, 2147483648
    %v127 = vsel %vm125, %v120, %v126
    %vm128 = vcmp.eq.s32.totalorder %v123, 2
    %v129 = vxor.u32 %v120, 2147483648
    %v130 = vsel %vm128, %v129, %v121
    %v131 = vsel %vm124, %v127, %v130
    %v132 = vsel %vm122, nan, %v131
    %133 = vst [vmem:[#allocation2] sm:$0xff] %v132
    %v134 = vand.u32 2147483647, %v29
    %vm135 = vcmp.le.f32.partialorder %v134, 0.7853982
    %vm136 = vcmp.lt.s32.totalorder %v29, 0
    %v137 = vand.u32 %v29, 2139095040
    %v138 = vshrl.u32 %v137, 23
    %v139 = vsub.s32 %v138, 127
    %v140 = vand.u32 2147483647, %v29
    %v141 = vand.u32 %v140, 8388607
    %v142 = vor.u32 %v141, 8388608
    %v143 = vsub.s32 0, %v142
    %v144 = vadd.s32 %v139, 1
    %vm145 = vcmp.gt.s32.totalorder %v144, 0
    %v146 = vsel %vm145, %v144, 0
    %v147 = vshrl.u32 %v146, 5
    %v148 = vand.u32 %v146, 31
    %v149 = vsub.s32 32, %v148
    %v150 = vshrl.u32 683565275, %v149
    %v151 = vshll.u32 683565275, %v148
    %v152 = vshrl.u32 2475754826, %v149
    %v153 = vor.u32 %v151, %v152
    %v154 = vshll.u32 2475754826, %v148
    %v155 = vshrl.u32 2131351028, %v149
    %v156 = vor.u32 %v154, %v155
    %v157 = vshll.u32 2131351028, %v148
    %v158 = vshrl.u32 2102212464, %v149
    %v159 = vor.u32 %v157, %v158
    %v160 = vshll.u32 2102212464, %v148
    %v161 = vshrl.u32 920167782, %v149
    %v162 = vor.u32 %v160, %v161
    %v163 = vshll.u32 920167782, %v148
    %v164 = vshrl.u32 1326507024, %v149
    %v165 = vor.u32 %v163, %v164
    %vm166 = vcmp.lt.s32.totalorder %v147, 1
    %vm167 = vcmp.lt.s32.totalorder %v147, 2
    %vm168 = vcmp.lt.s32.totalorder %v147, 3
    %vm169 = vcmp.lt.s32.totalorder %v147, 4
    %v170 = vsel %vm166, %v150, %v153
    %v171 = vsel %vm169, %v159, 2102212464
    %v172 = vsel %vm168, %v156, %v171
    %v173 = vsel %vm167, %v170, %v172
    %v174 = vsel %vm166, %v153, %v156
    %v175 = vsel %vm169, %v162, 920167782
    %v176 = vsel %vm168, %v159, %v175
    %v177 = vsel %vm167, %v174, %v176
    %v178 = vsel %vm166, %v156, %v159
    %v179 = vsel %vm169, %v165, 1326507024
    %v180 = vsel %vm168, %v162, %v179
    %v181 = vsel %vm167, %v178, %v180
    %v182 = vshll.u32 %v142, 8
    %v183 = vmul.u32.u64.compose %v182, %v181
    %v184 = vextract.low.u32 %v183
    %v185 = vextract.high.u32 %v183
    %v186 = vmul.u32.u64.compose %v182, %v177
    %v187 = vextract.low.u32 %v186
    %v188 = vextract.high.u32 %v186
    %v189 = vmul.u32 %v182, %v173
    %v190 = vadd.s32 %v185, %v187
    %vm191 = vc.u32 %v185, %v187
    %v192 = vadd.s32 %v188, 1
    %v193 = vsel %vm191, %v192, %v188
    %v194 = vadd.s32 %v189, %v193
    %v195 = vadd.s32 %v194, 536870912
    %v196 = vshrl.u32 %v195, 30
    %v197 = vshll.u32 %v196, 30
    %v198 = vsub.s32 %v194, %v197
    %vm199 = vcmp.lt.s32.totalorder %v198, 0
    %v200 = vsub.s32 0, %v198
    %v201 = vsel %vm199, %v200, %v198
    %v202 = vclz %v201
    %v203 = vsub.s32 %v202, 2
    %vm204 = vcmp.gt.s32.totalorder 0, %v203
    %v205 = vsel %vm204, 0, %v203
    %v206 = vsub.s32 32, %v205
    %v207 = vshll.u32 %v198, %v205
    %v208 = vshrl.u32 %v190, %v206
    %v209 = vor.u32 %v207, %v208
    %v210 = vsub.s32 4294967266, %v205
    %v211 = vadd.s32 %v210, 127
    %v212 = vshll.u32 %v211, 23
    %v213 = vor.u32 4788187, %v212
    %v214 = vand.u32 2147483647, %v213
    %v216 = vcvt.s32.f32 %v209
    %v217 = vmul.f32 %v216, %v214
    %v218 = vxor.u32 %v217, 2147483648
    %v219 = vsel %vm136, %v218, %v217
    %v220 = vsub.s32 4, %v196
    %v221 = vsel %vm136, %v220, %v196
    %v222 = vsel %vm135, %v29, %v219
    %v223 = vsel %vm135, 0, %v221
    %v224 = vcosq.f32.pop %v222
    %v225 = vsinq.f32.pop %v222
    %vm226 = vweird.f32 %v29
    %v227 = vadd.s32 %v223, 3
    %v228 = vand.u32 %v227, 3
    %vm229 = vcmp.lt.s32.totalorder %v228, 2
    %vm230 = vcmp.eq.s32.totalorder %v228, 0
    %v231 = vxor.u32 %v225, 2147483648
    %v232 = vsel %vm230, %v224, %v231
    %vm233 = vcmp.eq.s32.totalorder %v228, 2
    %v234 = vxor.u32 %v224, 2147483648
    %v235 = vsel %vm233, %v234, %v225
    %v236 = vsel %vm229, %v232, %v235
    %v237 = vsel %vm226, nan, %v236
    %238 = vst [vmem:[#allocation4] sm:$0xff] %v237
    // Predicated region
    $region10: #{tpu_custom_call.1} parent=1 // pred_check
      _
    $region11: #{tpu_custom_call.1} parent=1 // pred_check_branch
      %240 = sbr.rel (0) target = $region13
    $region12: #{tpu_custom_call.1} parent=1 // pred_region
      %s242 = ssub.s32 128, 128
      %243 = vsyncadd [#allocation3], %s242
      %s245 = sshll.u32 [#allocation2], 4
      %s246 = int_to_ptr.vmem [resolvable:$true] %s245
      %248 = dma.vmem_to_hbm [thread:$0]  %s246, 128, %s2, [#allocation3]
    $region13: #{tpu_custom_call.1} parent=1 // pred_fallthru
      _
    // Predicated region
    $region14: #{tpu_custom_call.1} parent=1 // pred_check
      _
    $region15: #{tpu_custom_call.1} parent=1 // pred_check_branch
      %250 = sbr.rel (0) target = $region17
    $region16: #{tpu_custom_call.1} parent=1 // pred_region
      %s252 = ssub.s32 128, 128
      %253 = vsyncadd [#allocation5], %s252
      %s255 = sshll.u32 [#allocation4], 4
      %s256 = int_to_ptr.vmem [resolvable:$true] %s255
      %258 = dma.vmem_to_hbm [thread:$0]  %s256, 128, %s3, [#allocation5]
    $region17: #{tpu_custom_call.1} parent=1 // pred_fallthru
      _
    // Predicated region
    $region18: #{tpu_custom_call.1} parent=1 // pred_check
      _
    $region19: #{tpu_custom_call.1} parent=1 // pred_check_branch
      %260 = sbr.rel (0) target = $region21
    $region20: #{tpu_custom_call.1} parent=1 // pred_region
      %261 = dma.done [#allocation3], 128
    $region21: #{tpu_custom_call.1} parent=1 // pred_fallthru
      _
    // Predicated region
    $region22: #{tpu_custom_call.1} parent=1 // pred_check
      _
    $region23: #{tpu_custom_call.1} parent=1 // pred_check_branch
      %263 = sbr.rel (0) target = $region25
    $region24: #{tpu_custom_call.1} parent=1 // pred_region
      %264 = dma.done [#allocation5], 128
    $region25: #{tpu_custom_call.1} parent=1 // pred_fallthru
      _
    %265 = vsyncpa [#allocation3], 1
    %266 = vsyncpa [#allocation5], 1

</llo_original>
